<compile_context>
chip_gen: v5e
topology: v5e:2x2
jax: 0.10.0
libtpu: 0.0.40
codegen_flags: <defaults>
</compile_context>

<pallas_src>
import jax
import jax.numpy as jnp
from jax import lax
from jax.experimental import pallas as pl
from jax.experimental.pallas import tpu as pltpu

EPS = 1e-5

_TILE_BYTES_TARGET = 4 * 1024 * 1024   # per x tile (+ padded param tile); capped for v7x
_PARAM_ROW_BYTES = 128 * 4              # (rows, 2) f32 param tile pads to 128 lanes in VMEM
_MIN_TOTAL_STEPS = 8                    # keep both v7x TensorCores fed on medium tensors


def _cdiv(a, b):
    return -(-a // b)


def _round_up(v, m):
    return _cdiv(v, m) * m


def _pick_tiles(R, COLS, dtype):
    """Lane-dense, cdiv-friendly tile shape targeting ~_TILE_BYTES_TARGET."""
    itemsize = jnp.dtype(dtype).itemsize
    row_unit = max(8, 32 // itemsize)        # 8 for f32, 16 for bf16/f16, 32 for int8/fp8

    cols_pad_full = _round_up(COLS, 128)     # lane footprint of a full-width row
    full_width_row_bytes = cols_pad_full * itemsize + _PARAM_ROW_BYTES

    if row_unit * full_width_row_bytes <= _TILE_BYTES_TARGET:
        # Full-width tiles: one contiguous HBM segment per block, 1-D-ish grid.
        tile_cols = COLS
        row_bytes = full_width_row_bytes
    else:
        # Must split the column axis: pick a 128-multiple as wide as the budget
        # allows for a row_unit-high block (guaranteed < COLS in this branch).
        tile_cols = max(
            128, (_TILE_BYTES_TARGET // (row_unit * itemsize)) // 128 * 128)
        row_bytes = tile_cols * itemsize + _PARAM_ROW_BYTES

    max_rows = max(row_unit,
                   (_TILE_BYTES_TARGET // row_bytes) // row_unit * row_unit)
    tile_rows = min(max_rows, _round_up(R, row_unit))

    # v7x megacore: prefer enough parallel grid steps to shard across both TCs.
    while (tile_rows > row_unit and
           _cdiv(R, tile_rows) * _cdiv(COLS, tile_cols) < _MIN_TOTAL_STEPS):
        tile_rows = max(row_unit, _round_up(tile_rows // 2, row_unit))

    # Full-extent block dims are always legal (covers R or COLS not aligned).
    if tile_rows >= R:
        tile_rows = R
    if tile_cols >= COLS:
        tile_cols = COLS
    return tile_rows, tile_cols


def _frozen_bn_kernel(params_ref, x_ref, o_ref):
    # params_ref: (TR, 2) float32 -> col 0 = scale, col 1 = shift (per row).
    # x_ref/o_ref: (TR, TC) lane-dense activation tiles.
    p = params_ref[...]
    scale = p[:, 0:1]                       # (TR, 1), f32
    shift = p[:, 1:2]                       # (TR, 1), f32
    x = x_ref[...].astype(jnp.float32)      # compute in f32 (VALU has huge slack)
    o_ref[...] = (x * scale + shift).astype(o_ref.dtype)


def frozen_batch_norm_2d(x, weight, bias, running_mean, running_var):
    """x: (N, C, H, W); params: (C,). Matches PyTorch FrozenBatchNorm2d.forward."""
    N, C, H, W = x.shape
    R = N * C
    COLS = H * W

    # O(C) affine precompute, kept in float32 (cast only the kernel output).
    w32 = weight.astype(jnp.float32)
    b32 = bias.astype(jnp.float32)
    rm32 = running_mean.astype(jnp.float32)
    rv32 = running_var.astype(jnp.float32)
    scale_c = w32 * lax.rsqrt(rv32 + EPS)                 # (C,)
    shift_c = b32 - rm32 * scale_c                        # (C,)

    # Fused per-row params: row r = n*C + c  ->  [scale_c[c], shift_c[c]].
    params_c = jnp.stack([scale_c, shift_c], axis=-1)     # (C, 2) f32
    params = jnp.broadcast_to(params_c[None], (N, C, 2)).reshape(R, 2)

    # Free, layout-preserving flatten of the contiguous NCHW tensor.
    x2 = x.reshape(R, COLS)

    tile_rows, tile_cols = _pick_tiles(R, COLS, x.dtype)
    grid = (pl.cdiv(R, tile_rows), pl.cdiv(COLS, tile_cols))

    param_spec = pl.BlockSpec((tile_rows, 2), lambda i, j: (i, 0))
    tile_spec = pl.BlockSpec((tile_rows, tile_cols), lambda i, j: (i, j))

    out2 = pl.pallas_call(
        _frozen_bn_kernel,
        out_shape=jax.ShapeDtypeStruct((R, COLS), x.dtype),
        grid=grid,
        in_specs=[param_spec, tile_spec],
        out_specs=tile_spec,
        compiler_params=pltpu.CompilerParams(
            # No reduction axes -> everything parallel (megacore sharding on v7x).
            dimension_semantics=("parallel", "parallel"),
            # ~4 MiB tiles, <= ~17 MiB live double-buffered: safe on every gen.
            vmem_limit_bytes=32 * 1024 * 1024,
        ),
    )(params, x2)

    return out2.reshape(N, C, H, W)


def frozen_batch_norm_2d_ref(x, weight, bias, running_mean, running_var):
    w = weight.reshape(1, -1, 1, 1)
    b = bias.reshape(1, -1, 1, 1)
    rv = running_var.reshape(1, -1, 1, 1)
    rm = running_mean.reshape(1, -1, 1, 1)
    scale = w * lax.rsqrt(rv + EPS)
    shift = b - rm * scale
    return x * scale + shift


if __name__ == "__main__":
    N, C, H, W = 2, 4, 16, 16

    key = jax.random.PRNGKey(0)
    kx, kw, kb, km, kv = jax.random.split(key, 5)

    x = jax.random.normal(kx, (N, C, H, W), dtype=jnp.float32)

    # Module __init__ uses ones/zeros buffers of size n=C; use deterministic
    # non-trivial values to exercise the math.
    weight = 1.0 + 0.1 * jax.random.normal(kw, (C,), dtype=jnp.float32)
    bias = 0.1 * jax.random.normal(kb, (C,), dtype=jnp.float32)
    running_mean = 0.5 * jax.random.normal(km, (C,), dtype=jnp.float32)
    running_var = jnp.abs(jax.random.normal(kv, (C,), dtype=jnp.float32)) + 0.5

    out = frozen_batch_norm_2d(x, weight, bias, running_mean, running_var)
    out = jax.block_until_ready(out)

    ref = frozen_batch_norm_2d_ref(x, weight, bias, running_mean, running_var)
    assert out.shape == (N, C, H, W) and out.dtype == jnp.float32
    assert jnp.allclose(out, ref, atol=1e-5, rtol=1e-5), "mismatch vs reference"

    print("KERNEL_OK")
</pallas_src>

<mosaic_0001>
module attributes {stable_mosaic.version = 11 : i64} {
  func.func @_frozen_bn_kernel(%arg0: i32, %arg1: i32, %arg2: memref<8x2xf32, #tpu.memory_space<vmem>>, %arg3: memref<8x256xf32, #tpu.memory_space<vmem>>, %arg4: memref<8x256xf32, #tpu.memory_space<vmem>>) attributes {dimension_semantics = [#tpu.dimension_semantics<parallel>, #tpu.dimension_semantics<parallel>], iteration_bounds = array<i64: 1, 1>, scalar_prefetch = 0 : i64, scratch_operands = 0 : i64, tpu.core_type = #tpu.core_type<tc>, window_params = [{transform_indices = @transform_0, window_bounds = array<i64: 8, 2>}, {transform_indices = @transform_1, window_bounds = array<i64: 8, 256>}, {transform_indices = @transform_2, window_bounds = array<i64: 8, 256>}]} {
    %c0 = arith.constant 0 : index
    %c0_0 = arith.constant 0 : index
    %0 = vector.load %arg2[%c0, %c0_0] : memref<8x2xf32, #tpu.memory_space<vmem>>, vector<8x2xf32>
    %1 = vector.extract_strided_slice %0 {offsets = [0, 0], sizes = [8, 1], strides = [1, 1]} : vector<8x2xf32> to vector<8x1xf32>
    %2 = vector.extract_strided_slice %0 {offsets = [0, 1], sizes = [8, 1], strides = [1, 1]} : vector<8x2xf32> to vector<8x1xf32>
    %c0_1 = arith.constant 0 : index
    %c0_2 = arith.constant 0 : index
    %3 = vector.load %arg3[%c0_1, %c0_2] : memref<8x256xf32, #tpu.memory_space<vmem>>, vector<8x256xf32>
    %4 = vector.broadcast %1 : vector<8x1xf32> to vector<8x256xf32>
    %5 = arith.mulf %3, %4 : vector<8x256xf32>
    %6 = vector.broadcast %2 : vector<8x1xf32> to vector<8x256xf32>
    %7 = arith.addf %5, %6 : vector<8x256xf32>
    %c0_3 = arith.constant 0 : index
    %c0_4 = arith.constant 0 : index
    %8 = vector.load %arg4[%c0_3, %c0_4] : memref<8x256xf32, #tpu.memory_space<vmem>>, vector<8x256xf32>
    tpu.vector_store %arg4[%c0_3, %c0_4], %7 {strides = array<i32>} : memref<8x256xf32, #tpu.memory_space<vmem>>, vector<8x256xf32>,
    return
  }
  func.func @transform_0(%arg0: i32, %arg1: i32) -> (i32, i32) {
    %c0_i32 = arith.constant 0 : i32
    %c0_i32_0 = arith.constant 0 : i32
    return %arg0, %c0_i32 : i32, i32
  }
  func.func @transform_1(%arg0: i32, %arg1: i32) -> (i32, i32) {
    %c0_i32 = arith.constant 0 : i32
    return %arg0, %arg1 : i32, i32
  }
  func.func @transform_2(%arg0: i32, %arg1: i32) -> (i32, i32) {
    %c0_i32 = arith.constant 0 : i32
    return %arg0, %arg1 : i32, i32
  }
}

</mosaic_0001>

<llo_original>
// kernel: tpu_custom_call.1
$region0: #{tpu_custom_call.1}
  #allocation0 [shape = 'u32[]', space=smem, size = 0x4, offset = 0x4, fixed_abs, tag = 'smem constant byte address 0x4 - core index']
  #allocation1 [shape = 'u32[72,128]{1,0:T(1,128)}', space=vmem, size = 0x9000, scoped, tag = 'internal scratch']
  %s0 = inlined_call_operand.vmem [shape: f32[8,2], index: 0, kind: input, shape index: {}]
  %s1 = inlined_call_operand.hbm [shape: f32[8,256], index: 1, kind: input, shape index: {}]
  %s2 = inlined_call_operand.hbm [shape: f32[8,256], index: 2, kind: output, shape index: {}]
  %s3 = sld [smem:[#allocation0]]
  $region22: #{tpu_custom_call.1} parent=0
    _
  %s5 = ssub.s32 1, %s3
  %s6 = scalar_select 0, %s5, %s3
  $region1: #{tpu_custom_call.1} parent=0
    #allocation2 [shape = 'u8[8192]{0}', space=vmem, size = 0x2000, scoped, tag = 'input window, operand 1, single buffered']
    #allocation3 [shape = 's32[1]{0}', space=sflag, size = 0x4, scoped, tag = 'scoped memory for tpu_custom_call.1']
    #allocation4 [shape = 's32[1]{0}', space=sflag, size = 0x4, scoped, tag = 'scoped memory for tpu_custom_call.1']
    #allocation5 [shape = 'u8[8192]{0}', space=vmem, size = 0x2000, scoped, tag = 'output window, operand 0, single buffered']
    %7 = vsyncpa [#allocation3], 0
    %8 = vsyncpa [#allocation4], 0
    // Predicated region
    $region2: #{tpu_custom_call.1} parent=1 // pred_check
      _
    $region3: #{tpu_custom_call.1} parent=1 // pred_check_branch
      %10 = sbr.rel (0) target = $region5
    $region4: #{tpu_custom_call.1} parent=1 // pred_region
      _
    $region5: #{tpu_custom_call.1} parent=1 // pred_fallthru
      _
    // Predicated region
    $region6: #{tpu_custom_call.1} parent=1 // pred_check
      _
    $region7: #{tpu_custom_call.1} parent=1 // pred_check_branch
      %12 = sbr.rel (0) target = $region9
    $region8: #{tpu_custom_call.1} parent=1 // pred_region
      %14 = vsyncadd [#allocation3], 0
      %s16 = sshll.u32 %s1, 4
      %s17 = int_to_ptr.hbm [resolvable:$true] %s16
      %s18 = sshll.u32 [#allocation2], 4
      %s19 = int_to_ptr.vmem [resolvable:$true] %s18
      %21 = dma.hbm_to_vmem [thread:$0]  %s17, 256, %s19, [#allocation3]
    $region9: #{tpu_custom_call.1} parent=1 // pred_fallthru
      _
    // Predicated region
    $region10: #{tpu_custom_call.1} parent=1 // pred_check
      _
    $region11: #{tpu_custom_call.1} parent=1 // pred_check_branch
      %23 = sbr.rel (0) target = $region13
    $region12: #{tpu_custom_call.1} parent=1 // pred_region
      %25 = dma.done [#allocation3], 256
    $region13: #{tpu_custom_call.1} parent=1 // pred_fallthru
      _
    %v26 = vld [vmem:[%s0] sm:$0xff]
    %v27 = vld [vmem:[#allocation2] sm:$0xff]
    %v28 = vld [vmem:[#allocation2 + $0x8] sm:$0xff]
    %30 = vset.pattern.permute.xlu0 0
    %31 = vperm.xlu0 %30, %v26
    %v32 = vpop.permute.xlu0 %31
    %v34 = vmul.f32 %v27, %v32
    %v35 = vmul.f32 %v28, %v32
    %36 = vset.pattern.permute.xlu0 1
    %37 = vperm.xlu0 %36, %v26
    %v38 = vpop.permute.xlu0 %37
    %v40 = vadd.f32 %v34, %v38
    %v41 = vadd.f32 %v35, %v38
    %42 = vst [vmem:[#allocation5] sm:$0xff] %v40
    %43 = vst [vmem:[#allocation5 + $0x8] sm:$0xff] %v41
    // Predicated region
    $region14: #{tpu_custom_call.1} parent=1 // pred_check
      _
    $region15: #{tpu_custom_call.1} parent=1 // pred_check_branch
      %45 = sbr.rel (0) target = $region17
    $region16: #{tpu_custom_call.1} parent=1 // pred_region
      %47 = vsyncadd [#allocation4], 0
      %s49 = sshll.u32 [#allocation5], 4
      %s50 = int_to_ptr.vmem [resolvable:$true] %s49
      %s51 = sshll.u32 %s2, 4
      %s52 = int_to_ptr.hbm [resolvable:$true] %s51
      %54 = dma.vmem_to_hbm [thread:$0]  %s50, 256, %s52, [#allocation4]
    $region17: #{tpu_custom_call.1} parent=1 // pred_fallthru
      _
    // Predicated region
    $region18: #{tpu_custom_call.1} parent=1 // pred_check
      _
    $region19: #{tpu_custom_call.1} parent=1 // pred_check_branch
      %56 = sbr.rel (0) target = $region21
    $region20: #{tpu_custom_call.1} parent=1 // pred_region
      %58 = dma.done [#allocation4], 256
    $region21: #{tpu_custom_call.1} parent=1 // pred_fallthru
      _
    %59 = vsyncpa [#allocation3], 1
    %60 = vsyncpa [#allocation4], 1

</llo_original>
